<compile_context>
chip_gen: v7x
topology: tpu7x:2x2x1
jax: 0.10.0
libtpu: 0.0.40
codegen_flags: <defaults>
</compile_context>

<pallas_src>
import functools
import math

import jax
import jax.numpy as jnp
from jax.experimental import pallas as pl
from jax.experimental.pallas import tpu as pltpu

_LANES = 128


def _sigmoid(x):
    # One EUP op (tanh) instead of exp + reciprocal.
    return 0.5 * (jnp.tanh(0.5 * x) + 1.0)


def _dice_partial_kernel(logits_ref, targets_ref,
                         inter_ref, sum_t_ref, sum_o_ref,
                         *, hw: int, tile_n: int, threshold):
    k = pl.program_id(1)

    @pl.when(k == 0)
    def _():
        inter_ref[...] = jnp.zeros_like(inter_ref)
        sum_t_ref[...] = jnp.zeros_like(sum_t_ref)
        sum_o_ref[...] = jnp.zeros_like(sum_o_ref)

    logits = logits_ref[...].astype(jnp.float32)    # (C, tile_n)
    targets = targets_ref[...].astype(jnp.float32)  # (C, tile_n)

    if threshold is None:
        outputs = _sigmoid(logits)                  # activation = "Sigmoid"
    elif 0.0 < threshold < 1.0:
        # sigmoid(x) > t  <=>  x > logit(t): skips the transcendental.
        logit_thr = math.log(threshold / (1.0 - threshold))
        outputs = (logits > logit_thr).astype(jnp.float32)
    else:
        outputs = (_sigmoid(logits) > threshold).astype(jnp.float32)

    if hw % tile_n != 0:
        # Ragged last tile: mask lanes past the true spatial extent.
        lane = jax.lax.broadcasted_iota(jnp.int32, logits.shape, 1)
        valid = (k * tile_n + lane) < hw
        outputs = jnp.where(valid, outputs, 0.0)
        targets = jnp.where(valid, targets, 0.0)

    # Blockwise lane-wide accumulation: VPU adds into (C, 128) accumulators
    # held in the (batch-resident) output refs; no per-iteration XLU reduce.
    inter = inter_ref[...]
    s_t = sum_t_ref[...]
    s_o = sum_o_ref[...]
    for s in range(tile_n // _LANES):
        lo, hi = s * _LANES, (s + 1) * _LANES
        o = outputs[:, lo:hi]
        t = targets[:, lo:hi]
        inter = inter + t * o
        s_t = s_t + t
        s_o = s_o + o
    inter_ref[...] = inter
    sum_t_ref[...] = s_t
    sum_o_ref[...] = s_o


def _choose_tile_n(c: int, hw: int, itemsize: int,
                   vmem_budget_bytes: int = 8 * 1024 * 1024) -> int:
    """Largest lane tile that keeps 2 inputs x 2 buffers within the budget."""
    max_by_vmem = vmem_budget_bytes // max(1, 4 * c * itemsize)
    tile = min(8192, max_by_vmem)
    tile = max(_LANES, (tile // _LANES) * _LANES)
    # No point tiling wider than HW rounded up to a lane multiple.
    hw_up = ((hw + _LANES - 1) // _LANES) * _LANES
    return min(tile, hw_up)


def dice_loss(logits, targets, *, eps: float = 1e-07, threshold=None,
              alpha: float = 1.0, tile_n=None):
    """1 - dice(sigmoid(logits), targets), matching the PyTorch DiceLoss."""
    assert logits.shape == targets.shape
    B, C, H, W = logits.shape
    HW = H * W

    # Free reshapes (contiguous) — no transpose, no pad copies.
    logits3 = logits.reshape(B, C, HW)
    targets3 = targets.reshape(B, C, HW)

    if tile_n is None:
        itemsize = max(jnp.dtype(logits.dtype).itemsize,
                       jnp.dtype(targets.dtype).itemsize)
        tile_n = _choose_tile_n(C, HW, itemsize)
    assert tile_n % _LANES == 0
    nt = pl.cdiv(HW, tile_n)

    kernel = functools.partial(_dice_partial_kernel, hw=HW, tile_n=tile_n,
                               threshold=threshold)

    part_shape = jax.ShapeDtypeStruct((B, C, _LANES), jnp.float32)
    out_spec = pl.BlockSpec((None, C, _LANES), lambda b, k: (b, 0, 0))
    in_spec = pl.BlockSpec((None, C, tile_n), lambda b, k: (b, 0, k))

    inter_p, sum_t_p, sum_o_p = pl.pallas_call(
        kernel,
        out_shape=(part_shape, part_shape, part_shape),
        grid_spec=pltpu.PrefetchScalarGridSpec(
            num_scalar_prefetch=0,
            grid=(B, nt),
            in_specs=[in_spec, in_spec],
            out_specs=(out_spec, out_spec, out_spec),
        ),
        compiler_params=pltpu.CompilerParams(
            dimension_semantics=("parallel", "arbitrary")),
    )(logits3, targets3)

    # Glue on small (B, C, 128) partials: final reduce + dice formula + mean.
    intersection = jnp.sum(inter_p, axis=(0, 2))                      # (C,)
    union = jnp.sum(sum_t_p, axis=(0, 2)) + jnp.sum(sum_o_p, axis=(0, 2))
    d = 2.0 * (intersection + eps * (union == 0.0).astype(jnp.float32)) / (union + eps)
    if alpha != 1.0:
        d = d ** alpha
    return 1.0 - jnp.mean(d)


def _dice_loss_ref(logits, targets, eps=1e-07, alpha=1.0, threshold=None):
    outputs = jax.nn.sigmoid(logits.astype(jnp.float32))
    if threshold is not None:
        outputs = (outputs > threshold).astype(jnp.float32)
    targets = targets.astype(jnp.float32)
    intersection = jnp.sum(targets * outputs, axis=(0, 2, 3))
    union = jnp.sum(targets, axis=(0, 2, 3)) + jnp.sum(outputs, axis=(0, 2, 3))
    d = 2.0 * (intersection + eps * (union == 0)) / (union + eps)
    d = d ** alpha
    return 1.0 - jnp.mean(d)


if __name__ == "__main__":
    key = jax.random.PRNGKey(0)
    k1, k2 = jax.random.split(key)

    B, C, H, W = 2, 4, 16, 16  # NCHW, matching the PyTorch convention
    logits = jax.random.normal(k1, (B, C, H, W), dtype=jnp.float32)
    targets = (jax.random.uniform(k2, (B, C, H, W)) > 0.5).astype(jnp.float32)

    loss = jax.block_until_ready(dice_loss(logits, targets))
    ref = jax.block_until_ready(_dice_loss_ref(logits, targets))

    assert jnp.allclose(loss, ref, atol=1e-5, rtol=1e-5), (loss, ref)
    print("KERNEL_OK")
</pallas_src>

<mosaic_0001>
module attributes {stable_mosaic.version = 11 : i64} {
  func.func @_dice_partial_kernel(%arg0: i32, %arg1: i32, %arg2: memref<1x4x256xf32, #tpu.memory_space<vmem>>, %arg3: memref<1x4x256xf32, #tpu.memory_space<vmem>>, %arg4: memref<1x4x128xf32, #tpu.memory_space<vmem>>, %arg5: memref<1x4x128xf32, #tpu.memory_space<vmem>>, %arg6: memref<1x4x128xf32, #tpu.memory_space<vmem>>) attributes {dimension_semantics = [#tpu.dimension_semantics<parallel>, #tpu.dimension_semantics<arbitrary>], iteration_bounds = array<i64: 2, 1>, scalar_prefetch = 0 : i64, scratch_operands = 0 : i64, tpu.core_type = #tpu.core_type<tc>, window_params = [{transform_indices = @transform_0, window_bounds = array<i64: 1, 4, 256>}, {transform_indices = @transform_1, window_bounds = array<i64: 1, 4, 256>}, {transform_indices = @transform_2, window_bounds = array<i64: 1, 4, 128>}, {transform_indices = @transform_3, window_bounds = array<i64: 1, 4, 128>}, {transform_indices = @transform_4, window_bounds = array<i64: 1, 4, 128>}]} {
    %c0_i32 = arith.constant 0 : i32
    %0 = arith.cmpi eq, %arg1, %c0_i32 : i32
    %1 = arith.extui %0 : i1 to i32
    %c0_i32_0 = arith.constant 0 : i32
    %2 = arith.cmpi ne, %1, %c0_i32_0 : i32
    scf.if %2 {
      %cst_26 = arith.constant 0.000000e+00 : f32
      %41 = vector.broadcast %cst_26 : f32 to vector<4x128xf32>
      %c0_27 = arith.constant 0 : index
      %c0_28 = arith.constant 0 : index
      %c0_29 = arith.constant 0 : index
      %42 = vector.load %arg4[%c0_27, %c0_28, %c0_29] : memref<1x4x128xf32, #tpu.memory_space<vmem>>, vector<1x4x128xf32>
      %43 = vector.shape_cast %42 : vector<1x4x128xf32> to vector<4x128xf32>
      %44 = vector.shape_cast %41 : vector<4x128xf32> to vector<1x4x128xf32>
      tpu.vector_store %arg4[%c0_27, %c0_28, %c0_29], %44 {strides = array<i32>} : memref<1x4x128xf32, #tpu.memory_space<vmem>>, vector<1x4x128xf32>,
      %cst_30 = arith.constant 0.000000e+00 : f32
      %45 = vector.broadcast %cst_30 : f32 to vector<4x128xf32>
      %c0_31 = arith.constant 0 : index
      %c0_32 = arith.constant 0 : index
      %c0_33 = arith.constant 0 : index
      %46 = vector.load %arg5[%c0_31, %c0_32, %c0_33] : memref<1x4x128xf32, #tpu.memory_space<vmem>>, vector<1x4x128xf32>
      %47 = vector.shape_cast %46 : vector<1x4x128xf32> to vector<4x128xf32>
      %48 = vector.shape_cast %45 : vector<4x128xf32> to vector<1x4x128xf32>
      tpu.vector_store %arg5[%c0_31, %c0_32, %c0_33], %48 {strides = array<i32>} : memref<1x4x128xf32, #tpu.memory_space<vmem>>, vector<1x4x128xf32>,
      %cst_34 = arith.constant 0.000000e+00 : f32
      %49 = vector.broadcast %cst_34 : f32 to vector<4x128xf32>
      %c0_35 = arith.constant 0 : index
      %c0_36 = arith.constant 0 : index
      %c0_37 = arith.constant 0 : index
      %50 = vector.load %arg6[%c0_35, %c0_36, %c0_37] : memref<1x4x128xf32, #tpu.memory_space<vmem>>, vector<1x4x128xf32>
      %51 = vector.shape_cast %50 : vector<1x4x128xf32> to vector<4x128xf32>
      %52 = vector.shape_cast %49 : vector<4x128xf32> to vector<1x4x128xf32>
      tpu.vector_store %arg6[%c0_35, %c0_36, %c0_37], %52 {strides = array<i32>} : memref<1x4x128xf32, #tpu.memory_space<vmem>>, vector<1x4x128xf32>,
    } else {
    }
    %c0 = arith.constant 0 : index
    %c0_1 = arith.constant 0 : index
    %c0_2 = arith.constant 0 : index
    %3 = vector.load %arg2[%c0, %c0_1, %c0_2] : memref<1x4x256xf32, #tpu.memory_space<vmem>>, vector<1x4x256xf32>
    %4 = vector.shape_cast %3 : vector<1x4x256xf32> to vector<4x256xf32>
    %c0_3 = arith.constant 0 : index
    %c0_4 = arith.constant 0 : index
    %c0_5 = arith.constant 0 : index
    %5 = vector.load %arg3[%c0_3, %c0_4, %c0_5] : memref<1x4x256xf32, #tpu.memory_space<vmem>>, vector<1x4x256xf32>
    %6 = vector.shape_cast %5 : vector<1x4x256xf32> to vector<4x256xf32>
    %cst = arith.constant 5.000000e-01 : f32
    %7 = vector.broadcast %cst : f32 to vector<4x256xf32>
    %8 = arith.mulf %7, %4 : vector<4x256xf32>
    %9 = math.tanh %8 : vector<4x256xf32>
    %cst_6 = arith.constant 1.000000e+00 : f32
    %10 = vector.broadcast %cst_6 : f32 to vector<4x256xf32>
    %11 = arith.addf %9, %10 : vector<4x256xf32>
    %cst_7 = arith.constant 5.000000e-01 : f32
    %12 = vector.broadcast %cst_7 : f32 to vector<4x256xf32>
    %13 = arith.mulf %12, %11 : vector<4x256xf32>
    %c0_8 = arith.constant 0 : index
    %c0_9 = arith.constant 0 : index
    %c0_10 = arith.constant 0 : index
    %14 = vector.load %arg4[%c0_8, %c0_9, %c0_10] : memref<1x4x128xf32, #tpu.memory_space<vmem>>, vector<1x4x128xf32>
    %15 = vector.shape_cast %14 : vector<1x4x128xf32> to vector<4x128xf32>
    %c0_11 = arith.constant 0 : index
    %c0_12 = arith.constant 0 : index
    %c0_13 = arith.constant 0 : index
    %16 = vector.load %arg5[%c0_11, %c0_12, %c0_13] : memref<1x4x128xf32, #tpu.memory_space<vmem>>, vector<1x4x128xf32>
    %17 = vector.shape_cast %16 : vector<1x4x128xf32> to vector<4x128xf32>
    %c0_14 = arith.constant 0 : index
    %c0_15 = arith.constant 0 : index
    %c0_16 = arith.constant 0 : index
    %18 = vector.load %arg6[%c0_14, %c0_15, %c0_16] : memref<1x4x128xf32, #tpu.memory_space<vmem>>, vector<1x4x128xf32>
    %19 = vector.shape_cast %18 : vector<1x4x128xf32> to vector<4x128xf32>
    %20 = vector.extract_strided_slice %13 {offsets = [0, 0], sizes = [4, 128], strides = [1, 1]} : vector<4x256xf32> to vector<4x128xf32>
    %21 = vector.extract_strided_slice %6 {offsets = [0, 0], sizes = [4, 128], strides = [1, 1]} : vector<4x256xf32> to vector<4x128xf32>
    %22 = arith.mulf %21, %20 : vector<4x128xf32>
    %23 = arith.addf %15, %22 : vector<4x128xf32>
    %24 = arith.addf %17, %21 : vector<4x128xf32>
    %25 = arith.addf %19, %20 : vector<4x128xf32>
    %26 = vector.extract_strided_slice %13 {offsets = [0, 128], sizes = [4, 128], strides = [1, 1]} : vector<4x256xf32> to vector<4x128xf32>
    %27 = vector.extract_strided_slice %6 {offsets = [0, 128], sizes = [4, 128], strides = [1, 1]} : vector<4x256xf32> to vector<4x128xf32>
    %28 = arith.mulf %27, %26 : vector<4x128xf32>
    %29 = arith.addf %23, %28 : vector<4x128xf32>
    %30 = arith.addf %24, %27 : vector<4x128xf32>
    %31 = arith.addf %25, %26 : vector<4x128xf32>
    %c0_17 = arith.constant 0 : index
    %c0_18 = arith.constant 0 : index
    %c0_19 = arith.constant 0 : index
    %32 = vector.load %arg4[%c0_17, %c0_18, %c0_19] : memref<1x4x128xf32, #tpu.memory_space<vmem>>, vector<1x4x128xf32>
    %33 = vector.shape_cast %32 : vector<1x4x128xf32> to vector<4x128xf32>
    %34 = vector.shape_cast %29 : vector<4x128xf32> to vector<1x4x128xf32>
    tpu.vector_store %arg4[%c0_17, %c0_18, %c0_19], %34 {strides = array<i32>} : memref<1x4x128xf32, #tpu.memory_space<vmem>>, vector<1x4x128xf32>,
    %c0_20 = arith.constant 0 : index
    %c0_21 = arith.constant 0 : index
    %c0_22 = arith.constant 0 : index
    %35 = vector.load %arg5[%c0_20, %c0_21, %c0_22] : memref<1x4x128xf32, #tpu.memory_space<vmem>>, vector<1x4x128xf32>
    %36 = vector.shape_cast %35 : vector<1x4x128xf32> to vector<4x128xf32>
    %37 = vector.shape_cast %30 : vector<4x128xf32> to vector<1x4x128xf32>
    tpu.vector_store %arg5[%c0_20, %c0_21, %c0_22], %37 {strides = array<i32>} : memref<1x4x128xf32, #tpu.memory_space<vmem>>, vector<1x4x128xf32>,
    %c0_23 = arith.constant 0 : index
    %c0_24 = arith.constant 0 : index
    %c0_25 = arith.constant 0 : index
    %38 = vector.load %arg6[%c0_23, %c0_24, %c0_25] : memref<1x4x128xf32, #tpu.memory_space<vmem>>, vector<1x4x128xf32>
    %39 = vector.shape_cast %38 : vector<1x4x128xf32> to vector<4x128xf32>
    %40 = vector.shape_cast %31 : vector<4x128xf32> to vector<1x4x128xf32>
    tpu.vector_store %arg6[%c0_23, %c0_24, %c0_25], %40 {strides = array<i32>} : memref<1x4x128xf32, #tpu.memory_space<vmem>>, vector<1x4x128xf32>,
    return
  }
  func.func @transform_0(%arg0: i32, %arg1: i32) -> (i32, i32, i32) {
    %c0_i32 = arith.constant 0 : i32
    %c0_i32_0 = arith.constant 0 : i32
    return %arg0, %c0_i32, %arg1 : i32, i32, i32
  }
  func.func @transform_1(%arg0: i32, %arg1: i32) -> (i32, i32, i32) {
    %c0_i32 = arith.constant 0 : i32
    %c0_i32_0 = arith.constant 0 : i32
    return %arg0, %c0_i32, %arg1 : i32, i32, i32
  }
  func.func @transform_2(%arg0: i32, %arg1: i32) -> (i32, i32, i32) {
    %c0_i32 = arith.constant 0 : i32
    %c0_i32_0 = arith.constant 0 : i32
    %c0_i32_1 = arith.constant 0 : i32
    return %arg0, %c0_i32, %c0_i32_0 : i32, i32, i32
  }
  func.func @transform_3(%arg0: i32, %arg1: i32) -> (i32, i32, i32) {
    %c0_i32 = arith.constant 0 : i32
    %c0_i32_0 = arith.constant 0 : i32
    %c0_i32_1 = arith.constant 0 : i32
    return %arg0, %c0_i32, %c0_i32_0 : i32, i32, i32
  }
  func.func @transform_4(%arg0: i32, %arg1: i32) -> (i32, i32, i32) {
    %c0_i32 = arith.constant 0 : i32
    %c0_i32_0 = arith.constant 0 : i32
    %c0_i32_1 = arith.constant 0 : i32
    return %arg0, %c0_i32, %c0_i32_0 : i32, i32, i32
  }
}

</mosaic_0001>

<llo_original>
// kernel: tpu_custom_call.1
$region0: #{tpu_custom_call.1}
  #allocation0 [shape = 'u32[]', space=smem, size = 0x4, offset = 0x4, fixed_abs, tag = 'smem constant byte address 0x4 - core index']
  #allocation1 [shape = 'u32[144,128]{1,0:T(1,128)}', space=vmem, size = 0x12000, scoped, tag = 'internal scratch']
  %s0 = inlined_call_operand.hbm [shape: f32[2,4,256], index: 0, kind: input, shape index: {}]
  %s1 = inlined_call_operand.hbm [shape: f32[2,4,256], index: 1, kind: input, shape index: {}]
  %s2 = inlined_call_operand.hbm [shape: f32[2,4,128], index: 2, kind: output, shape index: {0}]
  %s3 = inlined_call_operand.hbm [shape: f32[2,4,128], index: 3, kind: output, shape index: {1}]
  %s4 = inlined_call_operand.hbm [shape: f32[2,4,128], index: 4, kind: output, shape index: {2}]
  %5 = xla_tuple %s2, %s3, %s4
  %s6 = sld [smem:[#allocation0]]
  $region69: #{tpu_custom_call.1} parent=0
    _
  %s8 = ssub.s32 1, %s6
  %s9 = scalar_select 0, %s8, %s6
  $region1: #{tpu_custom_call.1} parent=0
    #allocation2 [shape = 'u8[8192]{0}', space=vmem, size = 0x2000, scoped, tag = 'input window, operand 0']
    #allocation3 [shape = 's32[2]{0}', space=sflag, size = 0x8, scoped, tag = 'scoped memory for tpu_custom_call.1']
    #allocation4 [shape = 's32[2]{0}', space=sflag, size = 0x8, scoped, tag = 'scoped memory for tpu_custom_call.1']
    #allocation5 [shape = 'u8[8192]{0}', space=vmem, size = 0x2000, scoped, tag = 'input window, operand 1']
    #allocation6 [shape = 's32[2]{0}', space=sflag, size = 0x8, scoped, tag = 'scoped memory for tpu_custom_call.1']
    #allocation7 [shape = 'u8[4096]{0}', space=vmem, size = 0x1000, scoped, tag = 'output window, operand 0']
    #allocation8 [shape = 'u8[4096]{0}', space=vmem, size = 0x1000, scoped, tag = 'output window, operand 1']
    #allocation9 [shape = 's32[2]{0}', space=sflag, size = 0x8, scoped, tag = 'scoped memory for tpu_custom_call.1']
    #allocation10 [shape = 'u8[4096]{0}', space=vmem, size = 0x1000, scoped, tag = 'output window, operand 2']
    %10 = vsyncpa [#allocation3], 0
    %s11 = scalar_lea.sflag [#allocation3], 1
    %12 = vsyncpa %s11, 0
    %13 = vsyncpa [#allocation6], 0
    %s14 = scalar_lea.sflag [#allocation6], 1
    %15 = vsyncpa %s14, 0
    %16 = vsyncpa [#allocation4], 0
    %s17 = scalar_lea.sflag [#allocation4], 1
    %18 = vsyncpa %s17, 0
    %19 = vsyncpa [#allocation9], 0
    %s20 = scalar_lea.sflag [#allocation9], 1
    %21 = vsyncpa %s20, 0
    loop: start=0, step=1, limit=4
    $region2: #{tpu_custom_call.1} parent=1 // loop_pre_header
      _
    $region3: #{tpu_custom_call.1} parent=1 // loop_header
      %s23 = sphi 0, %s27
      %p24 = scmp.ge.s32.totalorder %s23, 4
      %s30 = sphi 0, %s42
      %s31 = sphi 0, %s38
      %s32 = sphi 0, %s30
      %s33 = sphi 0, %s31
      %s34 = sphi 0, %s32
      %s35 = sphi 0, %s33
      %s47 = sphi 0, %s49
      %s50 = sphi 0, %s47
      %s51 = sphi 0, %s50
      %s67 = sphi 0, %s51
      %s75 = sphi 0, %s77
      %s78 = sphi 0, %s75
      %s79 = sphi 0, %s78
      %s95 = sphi 0, %s79
      %s101 = sphi 0, %s103
      %s104 = sphi 0, %s101
      %s105 = sphi 0, %s104
      %s121 = sphi 0, %s105
      %s127 = sphi 0, %s129
      %s130 = sphi 0, %s127
      %s131 = sphi 0, %s130
      %s147 = sphi 0, %s131
      %s153 = sphi 0, %s155
      %s156 = sphi 0, %s153
      %s157 = sphi 0, %s156
      %s173 = sphi 0, %s157
    $region4: #{tpu_custom_call.1} parent=1 // loop_header_branch
      %26 = sbr.rel (%p24) target = $region8
    $region5: #{tpu_custom_call.1} parent=1 // loop_body
      %s28 = ssub.s32 %s23, 1
      %s29 = ssub.s32 %s23, 2
      %s36 = sadd.s32 1, %s31
      %p37 = scmp.ge.s32.totalorder %s36, 1
      %s38 = scalar_select %p37, 0, %s36
      %s39 = sadd.s32 1, %s30
      %s40 = scalar_select %p37, %s39, %s30
      %p41 = scmp.ge.s32.totalorder %s40, 2
      %s42 = scalar_select %p41, 0, %s40
      %s43 = ssub.s32 %s30, %s42
      %s44 = ssub.s32 %s31, %s38
      %s45 = sor.u32 %s43, %s44
      %p46 = scmp.eq.s32.totalorder %s45, 0
      %s48 = sadd.s32 %s47, 1
      %s49 = scalar_select %p46, %s47, %s48
      %p52 = pneg %p46
      %p53 = scmp.eq.s32.totalorder %s23, 1
      %p54 = por %p52, %p53
      %p55 = scmp.ne.s32.totalorder %s47, %s50
      %p56 = scmp.eq.s32.totalorder %s23, 0
      %p57 = por %p55, %p56
      %p58 = scmp.ne.s32.totalorder %s47, %s50
      %p59 = scmp.eq.s32.totalorder %s28, 1
      %p60 = por %p58, %p59
      %p61 = scmp.ne.s32.totalorder %s50, %s51
      %p62 = scmp.eq.s32.totalorder %s28, 0
      %p63 = por %p61, %p62
      %p64 = scmp.ne.s32.totalorder %s50, %s51
      %p65 = scmp.eq.s32.totalorder %s29, 1
      %p66 = por %p64, %p65
      %p68 = scmp.ne.s32.totalorder %s51, %s67
      %p69 = scmp.eq.s32.totalorder %s29, 0
      %p70 = por %p68, %p69
      %s71 = ssub.s32 %s30, %s42
      %s72 = ssub.s32 %s31, %s38
      %s73 = sor.u32 %s71, %s72
      %p74 = scmp.eq.s32.totalorder %s73, 0
      %s76 = sadd.s32 %s75, 1
      %s77 = scalar_select %p74, %s75, %s76
      %p80 = pneg %p74
      %p81 = scmp.eq.s32.totalorder %s23, 1
      %p82 = por %p80, %p81
      %p83 = scmp.ne.s32.totalorder %s75, %s78
      %p84 = scmp.eq.s32.totalorder %s23, 0
      %p85 = por %p83, %p84
      %p86 = scmp.ne.s32.totalorder %s75, %s78
      %p87 = scmp.eq.s32.totalorder %s28, 1
      %p88 = por %p86, %p87
      %p89 = scmp.ne.s32.totalorder %s78, %s79
      %p90 = scmp.eq.s32.totalorder %s28, 0
      %p91 = por %p89, %p90
      %p92 = scmp.ne.s32.totalorder %s78, %s79
      %p93 = scmp.eq.s32.totalorder %s29, 1
      %p94 = por %p92, %p93
      %p96 = scmp.ne.s32.totalorder %s79, %s95
      %p97 = scmp.eq.s32.totalorder %s29, 0
      %p98 = por %p96, %p97
      %s99 = ssub.s32 %s30, %s42
      %p100 = scmp.eq.s32.totalorder %s99, 0
      %s102 = sadd.s32 %s101, 1
      %s103 = scalar_select %p100, %s101, %s102
      %p106 = pneg %p100
      %p107 = scmp.eq.s32.totalorder %s23, 1
      %p108 = por %p106, %p107
      %p109 = scmp.ne.s32.totalorder %s101, %s104
      %p110 = scmp.eq.s32.totalorder %s23, 0
      %p111 = por %p109, %p110
      %p112 = scmp.ne.s32.totalorder %s101, %s104
      %p113 = scmp.eq.s32.totalorder %s28, 1
      %p114 = por %p112, %p113
      %p115 = scmp.ne.s32.totalorder %s104, %s105
      %p116 = scmp.eq.s32.totalorder %s28, 0
      %p117 = por %p115, %p116
      %p118 = scmp.ne.s32.totalorder %s104, %s105
      %p119 = scmp.eq.s32.totalorder %s29, 1
      %p120 = por %p118, %p119
      %p122 = scmp.ne.s32.totalorder %s105, %s121
      %p123 = scmp.eq.s32.totalorder %s29, 0
      %p124 = por %p122, %p123
      %s125 = ssub.s32 %s30, %s42
      %p126 = scmp.eq.s32.totalorder %s125, 0
      %s128 = sadd.s32 %s127, 1
      %s129 = scalar_select %p126, %s127, %s128
      %p132 = pneg %p126
      %p133 = scmp.eq.s32.totalorder %s23, 1
      %p134 = por %p132, %p133
      %p135 = scmp.ne.s32.totalorder %s127, %s130
      %p136 = scmp.eq.s32.totalorder %s23, 0
      %p137 = por %p135, %p136
      %p138 = scmp.ne.s32.totalorder %s127, %s130
      %p139 = scmp.eq.s32.totalorder %s28, 1
      %p140 = por %p138, %p139
      %p141 = scmp.ne.s32.totalorder %s130, %s131
      %p142 = scmp.eq.s32.totalorder %s28, 0
      %p143 = por %p141, %p142
      %p144 = scmp.ne.s32.totalorder %s130, %s131
      %p145 = scmp.eq.s32.totalorder %s29, 1
      %p146 = por %p144, %p145
      %p148 = scmp.ne.s32.totalorder %s131, %s147
      %p149 = scmp.eq.s32.totalorder %s29, 0
      %p150 = por %p148, %p149
      %s151 = ssub.s32 %s30, %s42
      %p152 = scmp.eq.s32.totalorder %s151, 0
      %s154 = sadd.s32 %s153, 1
      %s155 = scalar_select %p152, %s153, %s154
      %p158 = pneg %p152
      %p159 = scmp.eq.s32.totalorder %s23, 1
      %p160 = por %p158, %p159
      %p161 = scmp.ne.s32.totalorder %s153, %s156
      %p162 = scmp.eq.s32.totalorder %s23, 0
      %p163 = por %p161, %p162
      %p164 = scmp.ne.s32.totalorder %s153, %s156
      %p165 = scmp.eq.s32.totalorder %s28, 1
      %p166 = por %p164, %p165
      %p167 = scmp.ne.s32.totalorder %s156, %s157
      %p168 = scmp.eq.s32.totalorder %s28, 0
      %p169 = por %p167, %p168
      %p170 = scmp.ne.s32.totalorder %s156, %s157
      %p171 = scmp.eq.s32.totalorder %s29, 1
      %p172 = por %p170, %p171
      %p174 = scmp.ne.s32.totalorder %s157, %s173
      %p175 = scmp.eq.s32.totalorder %s29, 0
      %p176 = por %p174, %p175
      %p177 = scmp.le.s32.totalorder 1, %s23
      %p178 = scmp.lt.s32.totalorder %s23, 3
      %p179 = pnand %p177, %p178
      %p180 = pneg %p179
      // Predicated region
      $region9: #{tpu_custom_call.1} parent=5 // pred_check
        _
      $region10: #{tpu_custom_call.1} parent=5 // pred_check_branch
        %182 = sbr.rel (%p179) target = $region12
      $region11: #{tpu_custom_call.1} parent=5 // pred_region
        %s183 = ssub.s32 %s23, 1
      $region12: #{tpu_custom_call.1} parent=5 // pred_fallthru
        _
      %p184 = scmp.lt.s32.totalorder %s23, 2
      // Predicated region
      $region13: #{tpu_custom_call.1} parent=5 // pred_check
        %p185 = pneg %p184
      $region14: #{tpu_custom_call.1} parent=5 // pred_check_branch
        %187 = sbr.rel (%p185) target = $region16
      $region15: #{tpu_custom_call.1} parent=5 // pred_region
        // Predicated region
        $region17: #{tpu_custom_call.1} parent=15 // pred_check
          %p188 = pneg %p57
        $region18: #{tpu_custom_call.1} parent=15 // pred_check_branch
          %190 = sbr.rel (%p188) target = $region20
        $region19: #{tpu_custom_call.1} parent=15 // pred_region
          %s191 = sand.u32 %s47, 1
          %s192 = scalar_lea.sflag [#allocation3], %s191
          %s193 = sand.u32 %s47, 1
          %s194 = smul.addr %s193, 8
          %s195 = scalar_lea.vmem [#allocation2], %s194
          %s196 = smul.u32 2, %s31
          %s198 = ssub.s32 128, 128
          %199 = vsyncadd %s192, %s198
          %s200 = smul.addr %s30, 2
          %s201 = sadd.s32 %s196, %s200
          %s202 = smul.addr %s201, 64
          %s203 = scalar_lea.hbm %s0, %s202
          %s205 = sshll.u32 %s195, 4
          %s206 = int_to_ptr.vmem [resolvable:$true] %s205
          %208 = dma.hbm_to_vmem [thread:$0]  %s203, 128, %s206, %s192
        $region20: #{tpu_custom_call.1} parent=15 // pred_fallthru
          _
        // Predicated region
        $region21: #{tpu_custom_call.1} parent=15 // pred_check
          %p209 = pneg %p85
        $region22: #{tpu_custom_call.1} parent=15 // pred_check_branch
          %211 = sbr.rel (%p209) target = $region24
        $region23: #{tpu_custom_call.1} parent=15 // pred_region
          %s212 = sand.u32 %s75, 1
          %s213 = scalar_lea.sflag [#allocation6], %s212
          %s214 = sand.u32 %s75, 1
          %s215 = smul.addr %s214, 8
          %s216 = scalar_lea.vmem [#allocation5], %s215
          %s217 = smul.u32 2, %s31
          %s219 = ssub.s32 128, 128
          %220 = vsyncadd %s213, %s219
          %s221 = smul.addr %s30, 2
          %s222 = sadd.s32 %s217, %s221
          %s223 = smul.addr %s222, 64
          %s224 = scalar_lea.hbm %s1, %s223
          %s226 = sshll.u32 %s216, 4
          %s227 = int_to_ptr.vmem [resolvable:$true] %s226
          %229 = dma.hbm_to_vmem [thread:$0]  %s224, 128, %s227, %s213
        $region24: #{tpu_custom_call.1} parent=15 // pred_fallthru
          _
      $region16: #{tpu_custom_call.1} parent=5 // pred_fallthru
        _
      %p230 = scmp.le.s32.totalorder 1, %s23
      %p231 = scmp.lt.s32.totalorder %s23, 3
      %p232 = pnand %p230, %p231
      %p233 = pneg %p232
      // Predicated region
      $region25: #{tpu_custom_call.1} parent=5 // pred_check
        _
      $region26: #{tpu_custom_call.1} parent=5 // pred_check_branch
        %235 = sbr.rel (%p232) target = $region28
      $region27: #{tpu_custom_call.1} parent=5 // pred_region
        %s236 = ssub.s32 %s23, 1
        %s237 = sand.u32 %s50, 1
        %s238 = scalar_lea.sflag [#allocation3], %s237
        %s239 = sand.u32 %s50, 1
        %s240 = smul.addr %s239, 8
        %s241 = scalar_lea.vmem [#allocation2], %s240
        // Predicated region
        $region29: #{tpu_custom_call.1} parent=27 // pred_check
          %p242 = pneg %p63
        $region30: #{tpu_custom_call.1} parent=27 // pred_check_branch
          %244 = sbr.rel (%p242) target = $region32
        $region31: #{tpu_custom_call.1} parent=27 // pred_region
          %245 = dma.done %s238, 128
        $region32: #{tpu_custom_call.1} parent=27 // pred_fallthru
          _
        %s246 = sand.u32 %s78, 1
        %s247 = scalar_lea.sflag [#allocation6], %s246
        %s248 = sand.u32 %s78, 1
        %s249 = smul.addr %s248, 8
        %s250 = scalar_lea.vmem [#allocation5], %s249
        // Predicated region
        $region33: #{tpu_custom_call.1} parent=27 // pred_check
          %p251 = pneg %p91
        $region34: #{tpu_custom_call.1} parent=27 // pred_check_branch
          %253 = sbr.rel (%p251) target = $region36
        $region35: #{tpu_custom_call.1} parent=27 // pred_region
          %254 = dma.done %s247, 128
        $region36: #{tpu_custom_call.1} parent=27 // pred_fallthru
          _
        %s255 = sand.u32 %s50, 1
        %s256 = scalar_lea.sflag [#allocation3], %s255
        %s257 = sand.u32 %s50, 1
        %s258 = smul.addr %s257, 8
        %s259 = scalar_lea.vmem [#allocation2], %s258
        %p260 = pneg %p63
        %p261 = pneg %p60
        %s262 = sand.u32 %s78, 1
        %s263 = scalar_lea.sflag [#allocation6], %s262
        %s264 = sand.u32 %s78, 1
        %s265 = smul.addr %s264, 8
        %s266 = scalar_lea.vmem [#allocation5], %s265
        %p267 = pneg %p91
        %p268 = pneg %p88
        %p269 = pneg %p117
        %p270 = pneg %p114
        %s271 = sand.u32 %s104, 1
        %s272 = scalar_lea.sflag [#allocation4], %s271
        %s273 = sand.u32 %s104, 1
        %s274 = smul.addr %s273, 4
        %s275 = scalar_lea.vmem [#allocation7], %s274
        %p276 = pneg %p143
        %p277 = pneg %p140
        %s278 = sand.u32 %s28, 1
        %s279 = scalar_lea.sflag [#allocation9], %s278
        %s280 = sand.u32 %s130, 1
        %s281 = smul.addr %s280, 4
        %s282 = scalar_lea.vmem [#allocation8], %s281
        %p283 = pneg %p169
        %p284 = pneg %p166
        %s285 = sand.u32 %s28, 1
        %s286 = scalar_lea.sflag [#allocation9], %s285
        %s287 = sand.u32 %s156, 1
        %s288 = smul.addr %s287, 4
        %s289 = scalar_lea.vmem [#allocation10], %s288
        %s290 = smul.u32 2, %s33
        %s291 = smul.u32 2, %s33
        %p292 = scmp.eq.s32.totalorder %s33, 0
        // Predicated region
        $region37: #{tpu_custom_call.1} parent=27 // pred_check
          %p293 = pneg %p292
        $region38: #{tpu_custom_call.1} parent=27 // pred_check_branch
          %295 = sbr.rel (%p293) target = $region40
        $region39: #{tpu_custom_call.1} parent=27 // pred_region
          %296 = vst [vmem:[%s275] sm:$0xf] 0.0
          %297 = vst [vmem:[%s282] sm:$0xf] 0.0
          %298 = vst [vmem:[%s289] sm:$0xf] 0.0
        $region40: #{tpu_custom_call.1} parent=27 // pred_fallthru
          _
        %v299 = vld [vmem:[%s241] sm:$0xff]
        %v300 = vld [vmem:[%s250] sm:$0xff]
        %v301 = vmul.f32 %v299, 0.5
        %v302 = vtanh.pop %v301
        %v303 = vadd.f32 %v302, 1.0
        %v304 = vmul.f32 %v303, 0.5
        %v305 = vld [vmem:[%s275] sm:$0xf]
        %v306 = vld [vmem:[%s282] sm:$0xf]
        %v307 = vld [vmem:[%s289] sm:$0xf]
        %v308 = vmul.f32 %v300, %v304
        %v309 = vadd.f32 %v305, %v308
        %v310 = vadd.f32 %v306, %v300
        %v311 = vadd.f32 %v307, %v304
        %v313 = vrot.slane %v300, 4
        %v316 = vrot.slane %v304, 4
        %v318 = vmul.f32 %v313, %v316
        %v319 = vadd.f32 %v309, %v318
        %v320 = vcombine.high %v300, %v300
        %v322 = vadd.f32 %v310, %v320
        %v323 = vcombine.high %v304, %v304
        %v325 = vadd.f32 %v311, %v323
        %326 = vst [vmem:[%s275] sm:$0xf] %v319
        %327 = vst [vmem:[%s282] sm:$0xf] %v322
        %328 = vst [vmem:[%s289] sm:$0xf] %v325
        %s329 = sand.u32 %s104, 1
        %s330 = scalar_lea.sflag [#allocation4], %s329
        %s331 = sand.u32 %s104, 1
        %s332 = smul.addr %s331, 4
        %s333 = scalar_lea.vmem [#allocation7], %s332
        %s334 = sand.u32 %s28, 1
        %s335 = scalar_lea.sflag [#allocation9], %s334
        %s336 = sand.u32 %s130, 1
        %s337 = smul.addr %s336, 4
        %s338 = scalar_lea.vmem [#allocation8], %s337
        %s339 = sand.u32 %s28, 1
        %s340 = scalar_lea.sflag [#allocation9], %s339
        %s341 = sand.u32 %s156, 1
        %s342 = smul.addr %s341, 4
        %s343 = scalar_lea.vmem [#allocation10], %s342
        // Predicated region
        $region41: #{tpu_custom_call.1} parent=27 // pred_check
          %p344 = pneg %p114
        $region42: #{tpu_custom_call.1} parent=27 // pred_check_branch
          %346 = sbr.rel (%p344) target = $region44
        $region43: #{tpu_custom_call.1} parent=27 // pred_region
          %s348 = ssub.s32 64, 64
          %349 = vsyncadd %s330, %s348
          %s350 = smul.addr %s32, 64
          %s351 = scalar_lea.hbm %s2, %s350
          %s353 = sshll.u32 %s333, 4
          %s354 = int_to_ptr.vmem [resolvable:$true] %s353
          %356 = dma.vmem_to_hbm [thread:$0]  %s354, 64, %s351, %s330
        $region44: #{tpu_custom_call.1} parent=27 // pred_fallthru
          _
        // Predicated region
        $region45: #{tpu_custom_call.1} parent=27 // pred_check
          %p357 = pneg %p140
        $region46: #{tpu_custom_call.1} parent=27 // pred_check_branch
          %359 = sbr.rel (%p357) target = $region48
        $region47: #{tpu_custom_call.1} parent=27 // pred_region
          %s361 = ssub.s32 64, 64
          %362 = vsyncadd %s335, %s361
          %s363 = smul.addr %s32, 64
          %s364 = scalar_lea.hbm %s3, %s363
          %s366 = sshll.u32 %s338, 4
          %s367 = int_to_ptr.vmem [resolvable:$true] %s366
          %369 = dma.vmem_to_hbm [thread:$0]  %s367, 64, %s364, %s335
        $region48: #{tpu_custom_call.1} parent=27 // pred_fallthru
          _
        // Predicated region
        $region49: #{tpu_custom_call.1} parent=27 // pred_check
          %p370 = pneg %p166
        $region50: #{tpu_custom_call.1} parent=27 // pred_check_branch
          %372 = sbr.rel (%p370) target = $region52
        $region51: #{tpu_custom_call.1} parent=27 // pred_region
          %s374 = ssub.s32 64, 64
          %375 = vsyncadd %s340, %s374
          %s376 = smul.addr %s32, 64
          %s377 = scalar_lea.hbm %s4, %s376
          %s379 = sshll.u32 %s343, 4
          %s380 = int_to_ptr.vmem [resolvable:$true] %s379
          %382 = dma.vmem_to_hbm [thread:$0]  %s380, 64, %s377, %s340
        $region52: #{tpu_custom_call.1} parent=27 // pred_fallthru
          _
      $region28: #{tpu_custom_call.1} parent=5 // pred_fallthru
        _
      %p383 = scmp.le.s32.totalorder 2, %s23
      // Predicated region
      $region53: #{tpu_custom_call.1} parent=5 // pred_check
        %p384 = pneg %p383
      $region54: #{tpu_custom_call.1} parent=5 // pred_check_branch
        %386 = sbr.rel (%p384) target = $region56
      $region55: #{tpu_custom_call.1} parent=5 // pred_region
        %s387 = ssub.s32 %s23, 2
        // Predicated region
        $region57: #{tpu_custom_call.1} parent=55 // pred_check
          %p388 = pneg %p120
        $region58: #{tpu_custom_call.1} parent=55 // pred_check_branch
          %390 = sbr.rel (%p388) target = $region60
        $region59: #{tpu_custom_call.1} parent=55 // pred_region
          %s391 = sand.u32 %s105, 1
          %s392 = scalar_lea.sflag [#allocation4], %s391
          %s393 = sand.u32 %s105, 1
          %s394 = smul.addr %s393, 4
          %s395 = scalar_lea.vmem [#allocation7], %s394
          %396 = dma.done %s392, 64
        $region60: #{tpu_custom_call.1} parent=55 // pred_fallthru
          _
        // Predicated region
        $region61: #{tpu_custom_call.1} parent=55 // pred_check
          %p397 = pneg %p146
        $region62: #{tpu_custom_call.1} parent=55 // pred_check_branch
          %399 = sbr.rel (%p397) target = $region64
        $region63: #{tpu_custom_call.1} parent=55 // pred_region
          %s400 = sand.u32 %s29, 1
          %s401 = scalar_lea.sflag [#allocation9], %s400
          %s402 = sand.u32 %s131, 1
          %s403 = smul.addr %s402, 4
          %s404 = scalar_lea.vmem [#allocation8], %s403
          %405 = dma.done %s401, 64
        $region64: #{tpu_custom_call.1} parent=55 // pred_fallthru
          _
        // Predicated region
        $region65: #{tpu_custom_call.1} parent=55 // pred_check
          %p406 = pneg %p172
        $region66: #{tpu_custom_call.1} parent=55 // pred_check_branch
          %408 = sbr.rel (%p406) target = $region68
        $region67: #{tpu_custom_call.1} parent=55 // pred_region
          %s409 = sand.u32 %s29, 1
          %s410 = scalar_lea.sflag [#allocation9], %s409
          %s411 = sand.u32 %s157, 1
          %s412 = smul.addr %s411, 4
          %s413 = scalar_lea.vmem [#allocation10], %s412
          %414 = dma.done %s410, 64
        $region68: #{tpu_custom_call.1} parent=55 // pred_fallthru
          _
      $region56: #{tpu_custom_call.1} parent=5 // pred_fallthru
        _
    $region6: #{tpu_custom_call.1} parent=1 // loop_footer
      %s27 = sadd.s32 1, %s23
    $region7: #{tpu_custom_call.1} parent=1 // loop_footer_branch
      %22 = sbr.rel target = $region3
    $region8: #{tpu_custom_call.1} parent=1 // loop_exit
      _
    %415 = vsyncpa [#allocation3], 1
    %s416 = scalar_lea.sflag [#allocation3], 1
    %417 = vsyncpa %s416, 1
    %418 = vsyncpa [#allocation6], 1
    %s419 = scalar_lea.sflag [#allocation6], 1
    %420 = vsyncpa %s419, 1
    %421 = vsyncpa [#allocation4], 1
    %s422 = scalar_lea.sflag [#allocation4], 1
    %423 = vsyncpa %s422, 1
    %424 = vsyncpa [#allocation9], 1
    %s425 = scalar_lea.sflag [#allocation9], 1
    %426 = vsyncpa %s425, 1

</llo_original>
